<compile_context>
chip_gen: v5e
topology: v5e:2x2
jax: 0.10.0
libtpu: 0.0.40
codegen_flags: <defaults>
</compile_context>

<pallas_src>
import functools

import jax
import jax.numpy as jnp
from jax.experimental import pallas as pl
from jax.experimental.pallas import tpu as pltpu


def _round_up(x, m):
    return (x + m - 1) // m * m


def _mlp_kernel(x_ref, w1_ref, b1_ref, w2_ref, b2_ref, w3_ref, b3_ref, o_ref):
    """Fused forward on one batch tile (possibly a ragged tail tile).

    Matmul inputs are bf16 (native MXU path); accumulation, bias adds and the
    ReLU/tanh epilogue are f32.
    """
    # In-kernel bf16 cast of x: avoids a separate f32->bf16 XLA pass over x.
    x = x_ref[...].astype(jnp.bfloat16)
    # layer_1: no activation (matches the PyTorch forward)
    h1 = jnp.dot(x, w1_ref[...], preferred_element_type=jnp.float32)
    h1 = (h1 + b1_ref[...]).astype(jnp.bfloat16)
    # layer_2 + relu
    h2 = jnp.dot(h1, w2_ref[...], preferred_element_type=jnp.float32)
    h2 = jnp.maximum(h2 + b2_ref[...], 0.0).astype(jnp.bfloat16)
    # layer_3 + tanh; output block is the un-padded (bb, d_out) slab.
    h3 = jnp.dot(h2, w3_ref[...], preferred_element_type=jnp.float32)
    o_ref[...] = jnp.tanh(h3 + b3_ref[...]).astype(o_ref.dtype)


def _pick_block(batch, requested):
    """Batch-tile size.

    Multiple of 8 (sublane tiling).  For large batches, force an even number
    (>= 2) of grid steps so v7x's two TensorCores (sharded via
    dimension_semantics=('parallel',)) both get balanced work; odd step counts
    leave one core with an extra tile.
    """
    bb = min(requested, _round_up(batch, 8))
    if batch >= 1024:
        steps = -(-batch // bb)                 # ceil
        steps = max(2, _round_up(steps, 2))     # even, >= 2
        bb = _round_up(-(-batch // steps), 8)
    return bb


def prepare_params(params):
    """One-time conversion for the kernel: bf16 [in, out] weights, f32 [1, out]
    biases.  Do this once at init, not per forward call."""
    return {
        "W1": jnp.asarray(params["W1"], jnp.bfloat16),
        "b1": jnp.asarray(params["b1"], jnp.float32).reshape(1, -1),
        "W2": jnp.asarray(params["W2"], jnp.bfloat16),
        "b2": jnp.asarray(params["b2"], jnp.float32).reshape(1, -1),
        "W3": jnp.asarray(params["W3"], jnp.bfloat16),
        "b3": jnp.asarray(params["b3"], jnp.float32).reshape(1, -1),
    }


@functools.partial(jax.jit, static_argnames=("block_b",))
def mlp_forward(x, params, block_b=2048):
    """x: [B, contex_dim] float32.  params: output of `prepare_params`
    (bf16 weights stored [in, out] = transpose of PyTorch's [out, in],
    f32 [1, out] biases)."""
    B, d_in = x.shape
    w1, b1 = params["W1"], params["b1"]
    w2, b2 = params["W2"], params["b2"]
    w3, b3 = params["W3"], params["b3"]
    d_hid = w1.shape[1]
    d_out = w3.shape[1]

    bb = _pick_block(B, block_b)
    grid = (pl.cdiv(B, bb),)  # ragged last block handled by Pallas (no jnp.pad)

    out = pl.pallas_call(
        _mlp_kernel,
        out_shape=jax.ShapeDtypeStruct((B, d_out), jnp.float32),
        grid_spec=pl.GridSpec(
            grid=grid,
            in_specs=[
                pl.BlockSpec((bb, d_in), lambda i: (i, 0)),       # x tile (f32)
                pl.BlockSpec((d_in, d_hid), lambda i: (0, 0)),    # W1 (resident)
                pl.BlockSpec((1, d_hid), lambda i: (0, 0)),       # b1
                pl.BlockSpec((d_hid, d_hid), lambda i: (0, 0)),   # W2
                pl.BlockSpec((1, d_hid), lambda i: (0, 0)),       # b2
                pl.BlockSpec((d_hid, d_out), lambda i: (0, 0)),   # W3
                pl.BlockSpec((1, d_out), lambda i: (0, 0)),       # b3
            ],
            # Un-padded output block: d_out equals the full array dim, so this
            # BlockSpec is legal; writeback is d_out*4 bytes/row (no 128-lane
            # f32 slab, no post-kernel slice).
            out_specs=pl.BlockSpec((bb, d_out), lambda i: (i, 0)),
        ),
        compiler_params=pltpu.CompilerParams(
            dimension_semantics=("parallel",),
        ),
    )(x, w1, b1, w2, b2, w3, b3)

    return out


def init_mlp_params(key, contex_dim, output_dim, hidden=256):
    """Deterministic init mimicking nn.Linear's U(-1/sqrt(fan_in), 1/sqrt(fan_in)).
    Weights stored as [in, out] (transpose of PyTorch's [out, in])."""
    keys = jax.random.split(key, 6)

    def linear(kw, kb, fan_in, fan_out):
        bound = 1.0 / jnp.sqrt(fan_in)
        w = jax.random.uniform(kw, (fan_in, fan_out), jnp.float32, -bound, bound)
        b = jax.random.uniform(kb, (fan_out,), jnp.float32, -bound, bound)
        return w, b

    w1, b1 = linear(keys[0], keys[1], contex_dim, hidden)
    w2, b2 = linear(keys[2], keys[3], hidden, hidden)
    w3, b3 = linear(keys[4], keys[5], hidden, output_dim)
    return {"W1": w1, "b1": b1, "W2": w2, "b2": b2, "W3": w3, "b3": b3}


def mlp_reference(x, params):
    """Pure-JAX f32 reference matching the PyTorch forward exactly."""
    h = x @ params["W1"] + params["b1"]
    h = jnp.maximum(h @ params["W2"] + params["b2"], 0.0)
    return jnp.tanh(h @ params["W3"] + params["b3"])


if __name__ == "__main__":
    key = jax.random.PRNGKey(0)
    k_param, k_x1, k_x2, k_x3 = jax.random.split(key, 4)

    contex_dim = 32
    output_dim = 16

    raw_params = init_mlp_params(k_param, contex_dim, output_dim)
    params = prepare_params(raw_params)  # one-time bf16 cast / reshape

    def check(x, out):
        ref = mlp_reference(x, raw_params)
        assert out.shape == ref.shape, (out.shape, ref.shape)
        err = jnp.max(jnp.abs(out - ref))
        assert jnp.allclose(out, ref, atol=5e-2, rtol=5e-2), (
            f"mismatch vs reference: max abs err {err}")

    # Case 1: small batch, single full block.
    x1 = jax.random.normal(k_x1, (8, contex_dim), jnp.float32)
    out1 = jax.block_until_ready(mlp_forward(x1, params))
    check(x1, out1)

    # Case 2: ragged batch with a small explicit tile -> 2 grid steps, the
    # last one a partial (masked-write) block.
    x2 = jax.random.normal(k_x2, (20, contex_dim), jnp.float32)
    out2 = jax.block_until_ready(mlp_forward(x2, params, block_b=16))
    check(x2, out2)

    # Case 3: larger batch with the default tile -> even 2-step grid
    # (both v7x TensorCores busy).
    x3 = jax.random.normal(k_x3, (2048, contex_dim), jnp.float32)
    out3 = jax.block_until_ready(mlp_forward(x3, params))
    check(x3, out3)

    print("KERNEL_OK")
</pallas_src>

<mosaic_0001>
module attributes {stable_mosaic.version = 11 : i64} {
  func.func @_mlp_kernel(%arg0: i32, %arg1: memref<8x32xf32, #tpu.memory_space<vmem>>, %arg2: memref<32x256xbf16, #tpu.memory_space<vmem>>, %arg3: memref<1x256xf32, #tpu.memory_space<vmem>>, %arg4: memref<256x256xbf16, #tpu.memory_space<vmem>>, %arg5: memref<1x256xf32, #tpu.memory_space<vmem>>, %arg6: memref<256x16xbf16, #tpu.memory_space<vmem>>, %arg7: memref<1x16xf32, #tpu.memory_space<vmem>>, %arg8: memref<8x16xf32, #tpu.memory_space<vmem>>) attributes {dimension_semantics = [#tpu.dimension_semantics<parallel>], iteration_bounds = array<i64: 1>, scalar_prefetch = 0 : i64, scratch_operands = 0 : i64, tpu.core_type = #tpu.core_type<tc>, window_params = [{transform_indices = @transform_0, window_bounds = array<i64: 8, 32>}, {pipeline_mode = #tpu.pipeline_mode<synchronous>, transform_indices = @transform_1, window_bounds = array<i64: 32, 256>}, {pipeline_mode = #tpu.pipeline_mode<synchronous>, transform_indices = @transform_2, window_bounds = array<i64: 1, 256>}, {pipeline_mode = #tpu.pipeline_mode<synchronous>, transform_indices = @transform_3, window_bounds = array<i64: 256, 256>}, {pipeline_mode = #tpu.pipeline_mode<synchronous>, transform_indices = @transform_4, window_bounds = array<i64: 1, 256>}, {pipeline_mode = #tpu.pipeline_mode<synchronous>, transform_indices = @transform_5, window_bounds = array<i64: 256, 16>}, {pipeline_mode = #tpu.pipeline_mode<synchronous>, transform_indices = @transform_6, window_bounds = array<i64: 1, 16>}, {transform_indices = @transform_7, window_bounds = array<i64: 8, 16>}]} {
    %c0 = arith.constant 0 : index
    %c0_0 = arith.constant 0 : index
    %0 = vector.load %arg1[%c0, %c0_0] : memref<8x32xf32, #tpu.memory_space<vmem>>, vector<8x32xf32>
    %1 = arith.truncf %0 : vector<8x32xf32> to vector<8x32xbf16>
    %c0_1 = arith.constant 0 : index
    %c0_2 = arith.constant 0 : index
    %2 = vector.load %arg2[%c0_1, %c0_2] : memref<32x256xbf16, #tpu.memory_space<vmem>>, vector<32x256xbf16>
    %cst = arith.constant dense<0.000000e+00> : vector<8x256xf32>
    %3 = tpu.matmul %1, %2, %cst {dimension_numbers = #tpu.dot_dimension_numbers<[1], [0], [0], [1], [0, 0, 1, 1], [], []>} : vector<8x32xbf16>, vector<32x256xbf16>, vector<8x256xf32> -> vector<8x256xf32>
    %c0_3 = arith.constant 0 : index
    %c0_4 = arith.constant 0 : index
    %4 = vector.load %arg3[%c0_3, %c0_4] : memref<1x256xf32, #tpu.memory_space<vmem>>, vector<1x256xf32>
    %5 = vector.broadcast %4 : vector<1x256xf32> to vector<8x256xf32>
    %6 = arith.addf %3, %5 : vector<8x256xf32>
    %7 = arith.truncf %6 : vector<8x256xf32> to vector<8x256xbf16>
    %c0_5 = arith.constant 0 : index
    %c0_6 = arith.constant 0 : index
    %8 = vector.load %arg4[%c0_5, %c0_6] : memref<256x256xbf16, #tpu.memory_space<vmem>>, vector<256x256xbf16>
    %cst_7 = arith.constant dense<0.000000e+00> : vector<8x256xf32>
    %9 = tpu.matmul %7, %8, %cst_7 {dimension_numbers = #tpu.dot_dimension_numbers<[1], [0], [0], [1], [0, 0, 1, 1], [], []>} : vector<8x256xbf16>, vector<256x256xbf16>, vector<8x256xf32> -> vector<8x256xf32>
    %c0_8 = arith.constant 0 : index
    %c0_9 = arith.constant 0 : index
    %10 = vector.load %arg5[%c0_8, %c0_9] : memref<1x256xf32, #tpu.memory_space<vmem>>, vector<1x256xf32>
    %11 = vector.broadcast %10 : vector<1x256xf32> to vector<8x256xf32>
    %12 = arith.addf %9, %11 : vector<8x256xf32>
    %cst_10 = arith.constant 0.000000e+00 : f32
    %13 = vector.broadcast %cst_10 : f32 to vector<8x256xf32>
    %14 = arith.maximumf %12, %13 : vector<8x256xf32>
    %15 = arith.truncf %14 : vector<8x256xf32> to vector<8x256xbf16>
    %c0_11 = arith.constant 0 : index
    %c0_12 = arith.constant 0 : index
    %16 = vector.load %arg6[%c0_11, %c0_12] : memref<256x16xbf16, #tpu.memory_space<vmem>>, vector<256x16xbf16>
    %cst_13 = arith.constant dense<0.000000e+00> : vector<8x16xf32>
    %17 = tpu.matmul %15, %16, %cst_13 {dimension_numbers = #tpu.dot_dimension_numbers<[1], [0], [0], [1], [0, 0, 1, 1], [], []>} : vector<8x256xbf16>, vector<256x16xbf16>, vector<8x16xf32> -> vector<8x16xf32>
    %c0_14 = arith.constant 0 : index
    %c0_15 = arith.constant 0 : index
    %18 = vector.load %arg7[%c0_14, %c0_15] : memref<1x16xf32, #tpu.memory_space<vmem>>, vector<1x16xf32>
    %19 = vector.broadcast %18 : vector<1x16xf32> to vector<8x16xf32>
    %20 = arith.addf %17, %19 : vector<8x16xf32>
    %21 = math.tanh %20 : vector<8x16xf32>
    %c0_16 = arith.constant 0 : index
    %c0_17 = arith.constant 0 : index
    %22 = vector.load %arg8[%c0_16, %c0_17] : memref<8x16xf32, #tpu.memory_space<vmem>>, vector<8x16xf32>
    tpu.vector_store %arg8[%c0_16, %c0_17], %21 {strides = array<i32>} : memref<8x16xf32, #tpu.memory_space<vmem>>, vector<8x16xf32>,
    return
  }
  func.func @transform_0(%arg0: i32) -> (i32, i32) {
    %c0_i32 = arith.constant 0 : i32
    %c0_i32_0 = arith.constant 0 : i32
    return %arg0, %c0_i32 : i32, i32
  }
  func.func @transform_1(%arg0: i32) -> (i32, i32) {
    %c0_i32 = arith.constant 0 : i32
    %c0_i32_0 = arith.constant 0 : i32
    %c0_i32_1 = arith.constant 0 : i32
    return %c0_i32, %c0_i32_0 : i32, i32
  }
  func.func @transform_2(%arg0: i32) -> (i32, i32) {
    %c0_i32 = arith.constant 0 : i32
    %c0_i32_0 = arith.constant 0 : i32
    %c0_i32_1 = arith.constant 0 : i32
    return %c0_i32, %c0_i32_0 : i32, i32
  }
  func.func @transform_3(%arg0: i32) -> (i32, i32) {
    %c0_i32 = arith.constant 0 : i32
    %c0_i32_0 = arith.constant 0 : i32
    %c0_i32_1 = arith.constant 0 : i32
    return %c0_i32, %c0_i32_0 : i32, i32
  }
  func.func @transform_4(%arg0: i32) -> (i32, i32) {
    %c0_i32 = arith.constant 0 : i32
    %c0_i32_0 = arith.constant 0 : i32
    %c0_i32_1 = arith.constant 0 : i32
    return %c0_i32, %c0_i32_0 : i32, i32
  }
  func.func @transform_5(%arg0: i32) -> (i32, i32) {
    %c0_i32 = arith.constant 0 : i32
    %c0_i32_0 = arith.constant 0 : i32
    %c0_i32_1 = arith.constant 0 : i32
    return %c0_i32, %c0_i32_0 : i32, i32
  }
  func.func @transform_6(%arg0: i32) -> (i32, i32) {
    %c0_i32 = arith.constant 0 : i32
    %c0_i32_0 = arith.constant 0 : i32
    %c0_i32_1 = arith.constant 0 : i32
    return %c0_i32, %c0_i32_0 : i32, i32
  }
  func.func @transform_7(%arg0: i32) -> (i32, i32) {
    %c0_i32 = arith.constant 0 : i32
    %c0_i32_0 = arith.constant 0 : i32
    return %arg0, %c0_i32 : i32, i32
  }
}

</mosaic_0001>

<llo_original>
// kernel: mlp_forward.1
$region0: #{mlp_forward.1}
  #allocation0 [shape = 'u32[]', space=smem, size = 0x4, offset = 0x4, fixed_abs, tag = 'smem constant byte address 0x4 - core index']
  #allocation1 [shape = 'u32[72,128]{1,0:T(1,128)}', space=vmem, size = 0x9000, scoped, tag = 'internal scratch']
  %s0 = inlined_call_operand.vmem [shape: f32[8,32], index: 0, kind: input, shape index: {}]
  %s1 = inlined_call_operand.vmem [shape: bf16[32,256], index: 1, kind: input, shape index: {}]
  %s2 = inlined_call_operand.vmem [shape: f32[1,256], index: 2, kind: input, shape index: {}]
  %s3 = inlined_call_operand.hbm [shape: bf16[256,256], index: 3, kind: input, shape index: {}]
  %s4 = inlined_call_operand.vmem [shape: f32[1,256], index: 4, kind: input, shape index: {}]
  %s5 = inlined_call_operand.vmem [shape: bf16[256,16], index: 5, kind: input, shape index: {}]
  %s6 = inlined_call_operand.vmem [shape: f32[1,16], index: 6, kind: input, shape index: {}]
  %s7 = inlined_call_operand.hbm [shape: f32[8,16], index: 7, kind: output, shape index: {}]
  %s8 = sld [smem:[#allocation0]]
  $region42: #{mlp_forward.1} parent=0
    _
  %s10 = ssub.s32 1, %s8
  %s11 = scalar_select 0, %s10, %s8
  $region1: #{mlp_forward.1} parent=0
    #allocation2 [shape = 'u8[131072]{0}', space=vmem, size = 0x20000, scoped, tag = 'input window, operand 3, single buffered']
    #allocation3 [shape = 's32[1]{0}', space=sflag, size = 0x4, scoped, tag = 'scoped memory for mlp_forward.1']
    #allocation4 [shape = 's32[1]{0}', space=sflag, size = 0x4, scoped, tag = 'scoped memory for mlp_forward.1']
    #allocation5 [shape = 'u8[4096]{0}', space=vmem, size = 0x1000, scoped, tag = 'output window, operand 0, single buffered']
    %12 = vsyncpa [#allocation3], 0
    %13 = vsyncpa [#allocation4], 0
    // Predicated region
    $region2: #{mlp_forward.1} parent=1 // pred_check
      _
    $region3: #{mlp_forward.1} parent=1 // pred_check_branch
      %15 = sbr.rel (0) target = $region5
    $region4: #{mlp_forward.1} parent=1 // pred_region
      _
    $region5: #{mlp_forward.1} parent=1 // pred_fallthru
      _
    // Predicated region
    $region6: #{mlp_forward.1} parent=1 // pred_check
      _
    $region7: #{mlp_forward.1} parent=1 // pred_check_branch
      %17 = sbr.rel (0) target = $region9
    $region8: #{mlp_forward.1} parent=1 // pred_region
      _
    $region9: #{mlp_forward.1} parent=1 // pred_fallthru
      _
    // Predicated region
    $region10: #{mlp_forward.1} parent=1 // pred_check
      _
    $region11: #{mlp_forward.1} parent=1 // pred_check_branch
      %19 = sbr.rel (0) target = $region13
    $region12: #{mlp_forward.1} parent=1 // pred_region
      _
    $region13: #{mlp_forward.1} parent=1 // pred_fallthru
      _
    // Predicated region
    $region14: #{mlp_forward.1} parent=1 // pred_check
      _
    $region15: #{mlp_forward.1} parent=1 // pred_check_branch
      %21 = sbr.rel (0) target = $region17
    $region16: #{mlp_forward.1} parent=1 // pred_region
      %23 = vsyncadd [#allocation3], 0
      %s24 = sshll.u32 %s3, 4
      %s25 = int_to_ptr.hbm [resolvable:$true] %s24
      %s26 = sshll.u32 [#allocation2], 4
      %s27 = int_to_ptr.vmem [resolvable:$true] %s26
      %32 = dma.hbm_to_vmem [thread:$0]  %s25, 4096, %s27, [#allocation3], 128, 128, 8
    $region17: #{mlp_forward.1} parent=1 // pred_fallthru
      _
    // Predicated region
    $region18: #{mlp_forward.1} parent=1 // pred_check
      _
    $region19: #{mlp_forward.1} parent=1 // pred_check_branch
      %34 = sbr.rel (0) target = $region21
    $region20: #{mlp_forward.1} parent=1 // pred_region
      _
    $region21: #{mlp_forward.1} parent=1 // pred_fallthru
      _
    // Predicated region
    $region22: #{mlp_forward.1} parent=1 // pred_check
      _
    $region23: #{mlp_forward.1} parent=1 // pred_check_branch
      %36 = sbr.rel (0) target = $region25
    $region24: #{mlp_forward.1} parent=1 // pred_region
      _
    $region25: #{mlp_forward.1} parent=1 // pred_fallthru
      _
    // Predicated region
    $region26: #{mlp_forward.1} parent=1 // pred_check
      _
    $region27: #{mlp_forward.1} parent=1 // pred_check_branch
      %38 = sbr.rel (0) target = $region29
    $region28: #{mlp_forward.1} parent=1 // pred_region
      _
    $region29: #{mlp_forward.1} parent=1 // pred_fallthru
      _
    // Predicated region
    $region30: #{mlp_forward.1} parent=1 // pred_check
      _
    $region31: #{mlp_forward.1} parent=1 // pred_check_branch
      %40 = sbr.rel (0) target = $region33
    $region32: #{mlp_forward.1} parent=1 // pred_region
      %42 = dma.done [#allocation3], 4096
    $region33: #{mlp_forward.1} parent=1 // pred_fallthru
      _
    %v44 = vld [vmem:[%s0] sm:$0xff]
    %v45 = vpack.c.bf16 %v44, %v44
    %v46 = vld [vmem:[%s1] sm:$0xff]
    %v47 = vld [vmem:[%s1 + $0x8] sm:$0xff]
    %v48 = vld [vmem:[%s1 + $0x10] sm:$0xff]
    %v49 = vld [vmem:[%s1 + $0x18] sm:$0xff]
    %v50 = vld [vmem:[%s2] sm:$0x3]
    %v52 = vperm.slane %v50, 0
    %v53 = vperm.slane %v50, 1
    %v60 = vunpack.c.l.b16 %v46
    %v61 = vunpack.c.h.b16 %v46
    %v62 = vunpack.c.l.b16 %v47
    %v63 = vunpack.c.h.b16 %v47
    %v64 = vunpack.c.l.b16 %v48
    %v65 = vunpack.c.h.b16 %v48
    %v66 = vunpack.c.l.b16 %v49
    %v67 = vunpack.c.h.b16 %v49
    %v68 = vpack.c.b16 %v62, %v60
    %v69 = vpack.c.b16 %v63, %v61
    %v70 = vpack.c.b16 %v66, %v64
    %v71 = vpack.c.b16 %v67, %v65
    %vm76 = vcmask 261120
    %v78 = vsel %vm76, %v45, 0
    %80 = vmatpush.bf16.msra.mxu0 0
    %81 = vmatpush.bf16.msra.mxu0 0
    %82 = vmatpush.bf16.msra.mxu0 0
    %83 = vmatpush.bf16.msra.mxu0 0
    %84 = vmatpush.bf16.msra.mxu0 0
    %85 = vmatpush.bf16.msra.mxu0 0
    %86 = vmatpush.bf16.msra.mxu0 %v70
    %87 = vmatpush.bf16.msra.mxu0 %v68
    %88 = vmatmul.bf16.gmra.mxu0 %v78
    %v89 = vpop.f32.mrf.mxu0
    %v90 = vadd.f32 %v52, %v89
    %v91 = vpop.f32.mrf.mxu0
    %92 = vdwg.mxu0
    %93 = vmatpush.bf16.msra.mxu0 0
    %94 = vmatpush.bf16.msra.mxu0 0
    %95 = vmatpush.bf16.msra.mxu0 0
    %96 = vmatpush.bf16.msra.mxu0 0
    %97 = vmatpush.bf16.msra.mxu0 0
    %98 = vmatpush.bf16.msra.mxu0 0
    %99 = vmatpush.bf16.msra.mxu0 %v71
    %100 = vmatpush.bf16.msra.mxu0 %v69
    %101 = vmatmul.bf16.gmra.mxu0 %v78
    %v102 = vpop.f32.mrf.mxu0
    %v103 = vadd.f32 %v53, %v102
    %v104 = vpop.f32.mrf.mxu0
    %105 = vdwg.mxu0
    %v106 = vpack.c.bf16 %v90, %v90
    %v107 = vpack.c.bf16 %v103, %v103
    %v108 = vld [vmem:[#allocation2] sm:$0xff]
    %v109 = vld [vmem:[#allocation2 + $0x8] sm:$0xff]
    %v110 = vld [vmem:[#allocation2 + $0x10] sm:$0xff]
    %v111 = vld [vmem:[#allocation2 + $0x18] sm:$0xff]
    %v112 = vld [vmem:[#allocation2 + $0x20] sm:$0xff]
    %v113 = vld [vmem:[#allocation2 + $0x28] sm:$0xff]
    %v114 = vld [vmem:[#allocation2 + $0x30] sm:$0xff]
    %v115 = vld [vmem:[#allocation2 + $0x38] sm:$0xff]
    %v116 = vld [vmem:[#allocation2 + $0x40] sm:$0xff]
    %v117 = vld [vmem:[#allocation2 + $0x48] sm:$0xff]
    %v118 = vld [vmem:[#allocation2 + $0x50] sm:$0xff]
    %v119 = vld [vmem:[#allocation2 + $0x58] sm:$0xff]
    %v120 = vld [vmem:[#allocation2 + $0x60] sm:$0xff]
    %v121 = vld [vmem:[#allocation2 + $0x68] sm:$0xff]
    %v122 = vld [vmem:[#allocation2 + $0x70] sm:$0xff]
    %v123 = vld [vmem:[#allocation2 + $0x78] sm:$0xff]
    %v124 = vld [vmem:[#allocation2 + $0x80] sm:$0xff]
    %v125 = vld [vmem:[#allocation2 + $0x88] sm:$0xff]
    %v126 = vld [vmem:[#allocation2 + $0x90] sm:$0xff]
    %v127 = vld [vmem:[#allocation2 + $0x98] sm:$0xff]
    %v128 = vld [vmem:[#allocation2 + $0xa0] sm:$0xff]
    %v129 = vld [vmem:[#allocation2 + $0xa8] sm:$0xff]
    %v130 = vld [vmem:[#allocation2 + $0xb0] sm:$0xff]
    %v131 = vld [vmem:[#allocation2 + $0xb8] sm:$0xff]
    %v132 = vld [vmem:[#allocation2 + $0xc0] sm:$0xff]
    %v133 = vld [vmem:[#allocation2 + $0xc8] sm:$0xff]
    %v134 = vld [vmem:[#allocation2 + $0xd0] sm:$0xff]
    %v135 = vld [vmem:[#allocation2 + $0xd8] sm:$0xff]
    %v136 = vld [vmem:[#allocation2 + $0xe0] sm:$0xff]
    %v137 = vld [vmem:[#allocation2 + $0xe8] sm:$0xff]
    %v138 = vld [vmem:[#allocation2 + $0xf0] sm:$0xff]
    %v139 = vld [vmem:[#allocation2 + $0xf8] sm:$0xff]
    %v140 = vld [vmem:[%s4] sm:$0x3]
    %v142 = vperm.slane %v140, 0
    %v143 = vperm.slane %v140, 1
    %v178 = vunpack.c.l.b16 %v108
    %v179 = vunpack.c.h.b16 %v108
    %v180 = vunpack.c.l.b16 %v109
    %v181 = vunpack.c.h.b16 %v109
    %v182 = vunpack.c.l.b16 %v110
    %v183 = vunpack.c.h.b16 %v110
    %v184 = vunpack.c.l.b16 %v111
    %v185 = vunpack.c.h.b16 %v111
    %v186 = vunpack.c.l.b16 %v112
    %v187 = vunpack.c.h.b16 %v112
    %v188 = vunpack.c.l.b16 %v113
    %v189 = vunpack.c.h.b16 %v113
    %v190 = vunpack.c.l.b16 %v114
    %v191 = vunpack.c.h.b16 %v114
    %v192 = vunpack.c.l.b16 %v115
    %v193 = vunpack.c.h.b16 %v115
    %v194 = vunpack.c.l.b16 %v116
    %v195 = vunpack.c.h.b16 %v116
    %v196 = vunpack.c.l.b16 %v117
    %v197 = vunpack.c.h.b16 %v117
    %v198 = vunpack.c.l.b16 %v118
    %v199 = vunpack.c.h.b16 %v118
    %v200 = vunpack.c.l.b16 %v119
    %v201 = vunpack.c.h.b16 %v119
    %v202 = vunpack.c.l.b16 %v120
    %v203 = vunpack.c.h.b16 %v120
    %v204 = vunpack.c.l.b16 %v121
    %v205 = vunpack.c.h.b16 %v121
    %v206 = vunpack.c.l.b16 %v122
    %v207 = vunpack.c.h.b16 %v122
    %v208 = vunpack.c.l.b16 %v123
    %v209 = vunpack.c.h.b16 %v123
    %v210 = vunpack.c.l.b16 %v124
    %v211 = vunpack.c.h.b16 %v124
    %v212 = vunpack.c.l.b16 %v125
    %v213 = vunpack.c.h.b16 %v125
    %v214 = vunpack.c.l.b16 %v126
    %v215 = vunpack.c.h.b16 %v126
    %v216 = vunpack.c.l.b16 %v127
    %v217 = vunpack.c.h.b16 %v127
    %v218 = vunpack.c.l.b16 %v128
    %v219 = vunpack.c.h.b16 %v128
    %v220 = vunpack.c.l.b16 %v129
    %v221 = vunpack.c.h.b16 %v129
    %v222 = vunpack.c.l.b16 %v130
    %v223 = vunpack.c.h.b16 %v130
    %v224 = vunpack.c.l.b16 %v131
    %v225 = vunpack.c.h.b16 %v131
    %v226 = vunpack.c.l.b16 %v132
    %v227 = vunpack.c.h.b16 %v132
    %v228 = vunpack.c.l.b16 %v133
    %v229 = vunpack.c.h.b16 %v133
    %v230 = vunpack.c.l.b16 %v134
    %v231 = vunpack.c.h.b16 %v134
    %v232 = vunpack.c.l.b16 %v135
    %v233 = vunpack.c.h.b16 %v135
    %v234 = vunpack.c.l.b16 %v136
    %v235 = vunpack.c.h.b16 %v136
    %v236 = vunpack.c.l.b16 %v137
    %v237 = vunpack.c.h.b16 %v137
    %v238 = vunpack.c.l.b16 %v138
    %v239 = vunpack.c.h.b16 %v138
    %v240 = vunpack.c.l.b16 %v139
    %v241 = vunpack.c.h.b16 %v139
    %v242 = vpack.c.b16 %v180, %v178
    %v243 = vpack.c.b16 %v181, %v179
    %v244 = vpack.c.b16 %v184, %v182
    %v245 = vpack.c.b16 %v185, %v183
    %v246 = vpack.c.b16 %v188, %v186
    %v247 = vpack.c.b16 %v189, %v187
    %v248 = vpack.c.b16 %v192, %v190
    %v249 = vpack.c.b16 %v193, %v191
    %v250 = vpack.c.b16 %v196, %v194
    %v251 = vpack.c.b16 %v197, %v195
    %v252 = vpack.c.b16 %v200, %v198
    %v253 = vpack.c.b16 %v201, %v199
    %v254 = vpack.c.b16 %v204, %v202
    %v255 = vpack.c.b16 %v205, %v203
    %v256 = vpack.c.b16 %v208, %v206
    %v257 = vpack.c.b16 %v209, %v207
    %v258 = vpack.c.b16 %v212, %v210
    %v259 = vpack.c.b16 %v213, %v211
    %v260 = vpack.c.b16 %v216, %v214
    %v261 = vpack.c.b16 %v217, %v215
    %v262 = vpack.c.b16 %v220, %v218
    %v263 = vpack.c.b16 %v221, %v219
    %v264 = vpack.c.b16 %v224, %v222
    %v265 = vpack.c.b16 %v225, %v223
    %v266 = vpack.c.b16 %v228, %v226
    %v267 = vpack.c.b16 %v229, %v227
    %v268 = vpack.c.b16 %v232, %v230
    %v269 = vpack.c.b16 %v233, %v231
    %v270 = vpack.c.b16 %v236, %v234
    %v271 = vpack.c.b16 %v237, %v235
    %v272 = vpack.c.b16 %v240, %v238
    %v273 = vpack.c.b16 %v241, %v239
    %306 = vmatpush.bf16.msra.mxu0 %v256
    %307 = vmatpush.bf16.msra.mxu0 %v254
    %308 = vmatpush.bf16.msra.mxu0 %v252
    %309 = vmatpush.bf16.msra.mxu0 %v250
    %310 = vmatpush.bf16.msra.mxu0 %v248
    %311 = vmatpush.bf16.msra.mxu0 %v246
    %312 = vmatpush.bf16.msra.mxu0 %v244
    %313 = vmatpush.bf16.msra.mxu0 %v242
    %314 = vmatmul.bf16.gmra.mxu0 %v106
    %v315 = vpop.f32.mrf.mxu0
    %v316 = vadd.f32 %v142, %v315
    %v317 = vpop.f32.mrf.mxu0
    %318 = vdwg.mxu0
    %319 = vmatpush.bf16.msra.mxu0 %v272
    %320 = vmatpush.bf16.msra.mxu0 %v270
    %321 = vmatpush.bf16.msra.mxu0 %v268
    %322 = vmatpush.bf16.msra.mxu0 %v266
    %323 = vmatpush.bf16.msra.mxu0 %v264
    %324 = vmatpush.bf16.msra.mxu0 %v262
    %325 = vmatpush.bf16.msra.mxu0 %v260
    %326 = vmatpush.bf16.msra.mxu0 %v258
    %327 = vmatmul.bf16.gmra.mxu0 %v107
    %v328 = vpop.f32.mrf.mxu0
    %v329 = vadd.f32 %v316, %v328
    %v330 = vpop.f32.mrf.mxu0
    %331 = vdwg.mxu0
    %332 = vmatpush.bf16.msra.mxu0 %v257
    %333 = vmatpush.bf16.msra.mxu0 %v255
    %334 = vmatpush.bf16.msra.mxu0 %v253
    %335 = vmatpush.bf16.msra.mxu0 %v251
    %336 = vmatpush.bf16.msra.mxu0 %v249
    %337 = vmatpush.bf16.msra.mxu0 %v247
    %338 = vmatpush.bf16.msra.mxu0 %v245
    %339 = vmatpush.bf16.msra.mxu0 %v243
    %340 = vmatmul.bf16.gmra.mxu0 %v106
    %v341 = vpop.f32.mrf.mxu0
    %v342 = vadd.f32 %v143, %v341
    %v343 = vpop.f32.mrf.mxu0
    %344 = vdwg.mxu0
    %345 = vmatpush.bf16.msra.mxu0 %v273
    %346 = vmatpush.bf16.msra.mxu0 %v271
    %347 = vmatpush.bf16.msra.mxu0 %v269
    %348 = vmatpush.bf16.msra.mxu0 %v267
    %349 = vmatpush.bf16.msra.mxu0 %v265
    %350 = vmatpush.bf16.msra.mxu0 %v263
    %351 = vmatpush.bf16.msra.mxu0 %v261
    %352 = vmatpush.bf16.msra.mxu0 %v259
    %353 = vmatmul.bf16.gmra.mxu0 %v107
    %v354 = vpop.f32.mrf.mxu0
    %v355 = vadd.f32 %v342, %v354
    %v356 = vpop.f32.mrf.mxu0
    %357 = vdwg.mxu0
    %v358 = vmax.f32 %v329, 0.0
    %v359 = vmax.f32 %v355, 0.0
    %v360 = vpack.c.bf16 %v358, %v358
    %v361 = vpack.c.bf16 %v359, %v359
    %v362 = vld [vmem:[%s5] sm:$0xf]
    %v363 = vld [vmem:[%s5 + $0x4] sm:$0xf]
    %v364 = vld [vmem:[%s5 + $0x8] sm:$0xf]
    %v365 = vld [vmem:[%s5 + $0xc] sm:$0xf]
    %v366 = vld [vmem:[%s5 + $0x10] sm:$0xf]
    %v367 = vld [vmem:[%s5 + $0x14] sm:$0xf]
    %v368 = vld [vmem:[%s5 + $0x18] sm:$0xf]
    %v369 = vld [vmem:[%s5 + $0x1c] sm:$0xf]
    %v370 = vld [vmem:[%s5 + $0x20] sm:$0xf]
    %v371 = vld [vmem:[%s5 + $0x24] sm:$0xf]
    %v372 = vld [vmem:[%s5 + $0x28] sm:$0xf]
    %v373 = vld [vmem:[%s5 + $0x2c] sm:$0xf]
    %v374 = vld [vmem:[%s5 + $0x30] sm:$0xf]
    %v375 = vld [vmem:[%s5 + $0x34] sm:$0xf]
    %v376 = vld [vmem:[%s5 + $0x38] sm:$0xf]
    %v377 = vld [vmem:[%s5 + $0x3c] sm:$0xf]
    %v378 = vld [vmem:[%s5 + $0x40] sm:$0xf]
    %v379 = vld [vmem:[%s5 + $0x44] sm:$0xf]
    %v380 = vld [vmem:[%s5 + $0x48] sm:$0xf]
    %v381 = vld [vmem:[%s5 + $0x4c] sm:$0xf]
    %v382 = vld [vmem:[%s5 + $0x50] sm:$0xf]
    %v383 = vld [vmem:[%s5 + $0x54] sm:$0xf]
    %v384 = vld [vmem:[%s5 + $0x58] sm:$0xf]
    %v385 = vld [vmem:[%s5 + $0x5c] sm:$0xf]
    %v386 = vld [vmem:[%s5 + $0x60] sm:$0xf]
    %v387 = vld [vmem:[%s5 + $0x64] sm:$0xf]
    %v388 = vld [vmem:[%s5 + $0x68] sm:$0xf]
    %v389 = vld [vmem:[%s5 + $0x6c] sm:$0xf]
    %v390 = vld [vmem:[%s5 + $0x70] sm:$0xf]
    %v391 = vld [vmem:[%s5 + $0x74] sm:$0xf]
    %v392 = vld [vmem:[%s5 + $0x78] sm:$0xf]
    %v393 = vld [vmem:[%s5 + $0x7c] sm:$0xf]
    %v394 = vld [vmem:[%s6] sm:$0x1]
    %v396 = vperm.slane %v394, 0
    %v430 = vunpack.c.l.b16 %v362
    %v431 = vunpack.c.l.b16 %v363
    %v432 = vunpack.c.l.b16 %v364
    %v433 = vunpack.c.l.b16 %v365
    %v434 = vunpack.c.l.b16 %v366
    %v435 = vunpack.c.l.b16 %v367
    %v436 = vunpack.c.l.b16 %v368
    %v437 = vunpack.c.l.b16 %v369
    %v438 = vunpack.c.l.b16 %v370
    %v439 = vunpack.c.l.b16 %v371
    %v440 = vunpack.c.l.b16 %v372
    %v441 = vunpack.c.l.b16 %v373
    %v442 = vunpack.c.l.b16 %v374
    %v443 = vunpack.c.l.b16 %v375
    %v444 = vunpack.c.l.b16 %v376
    %v445 = vunpack.c.l.b16 %v377
    %v446 = vunpack.c.l.b16 %v378
    %v447 = vunpack.c.l.b16 %v379
    %v448 = vunpack.c.l.b16 %v380
    %v449 = vunpack.c.l.b16 %v381
    %v450 = vunpack.c.l.b16 %v382
    %v451 = vunpack.c.l.b16 %v383
    %v452 = vunpack.c.l.b16 %v384
    %v453 = vunpack.c.l.b16 %v385
    %v454 = vunpack.c.l.b16 %v386
    %v455 = vunpack.c.l.b16 %v387
    %v456 = vunpack.c.l.b16 %v388
    %v457 = vunpack.c.l.b16 %v389
    %v458 = vunpack.c.l.b16 %v390
    %v459 = vunpack.c.l.b16 %v391
    %v460 = vunpack.c.l.b16 %v392
    %v461 = vunpack.c.l.b16 %v393
    %v462 = vpack.c.b16 %v431, %v430
    %v463 = vpack.c.b16 %v433, %v432
    %v464 = vpack.c.b16 %v435, %v434
    %v465 = vpack.c.b16 %v437, %v436
    %v466 = vpack.c.b16 %v439, %v438
    %v467 = vpack.c.b16 %v441, %v440
    %v468 = vpack.c.b16 %v443, %v442
    %v469 = vpack.c.b16 %v445, %v444
    %v470 = vpack.c.b16 %v447, %v446
    %v471 = vpack.c.b16 %v449, %v448
    %v472 = vpack.c.b16 %v451, %v450
    %v473 = vpack.c.b16 %v453, %v452
    %v474 = vpack.c.b16 %v455, %v454
    %v475 = vpack.c.b16 %v457, %v456
    %v476 = vpack.c.b16 %v459, %v458
    %v477 = vpack.c.b16 %v461, %v460
    %494 = vmatpush.bf16.msra.mxu0 %v469
    %495 = vmatpush.bf16.msra.mxu0 %v468
    %496 = vmatpush.bf16.msra.mxu0 %v467
    %497 = vmatpush.bf16.msra.mxu0 %v466
    %498 = vmatpush.bf16.msra.mxu0 %v465
    %499 = vmatpush.bf16.msra.mxu0 %v464
    %500 = vmatpush.bf16.msra.mxu0 %v463
    %501 = vmatpush.bf16.msra.mxu0 %v462
    %502 = vmatmul.bf16.gmra.mxu0 %v360
    %v503 = vpop.f32.mrf.mxu0
    %v504 = vadd.f32 %v396, %v503
    %v505 = vpop.f32.mrf.mxu0
    %506 = vdwg.mxu0
    %507 = vmatpush.bf16.msra.mxu0 %v477
    %508 = vmatpush.bf16.msra.mxu0 %v476
    %509 = vmatpush.bf16.msra.mxu0 %v475
    %510 = vmatpush.bf16.msra.mxu0 %v474
    %511 = vmatpush.bf16.msra.mxu0 %v473
    %512 = vmatpush.bf16.msra.mxu0 %v472
    %513 = vmatpush.bf16.msra.mxu0 %v471
    %514 = vmatpush.bf16.msra.mxu0 %v470
    %515 = vmatmul.bf16.gmra.mxu0 %v361
    %v516 = vpop.f32.mrf.mxu0
    %v517 = vadd.f32 %v504, %v516
    %v518 = vpop.f32.mrf.mxu0
    %519 = vdwg.mxu0
    %v520 = vtanh.pop %v517
    %vm521 = vcmask 130048
    %522 = vst.msk [vmem:[#allocation5] sm:$0xff] %vm521, %v520
    // Predicated region
    $region34: #{mlp_forward.1} parent=1 // pred_check
      _
    $region35: #{mlp_forward.1} parent=1 // pred_check_branch
      %524 = sbr.rel (0) target = $region37
    $region36: #{mlp_forward.1} parent=1 // pred_region
      %526 = vsyncadd [#allocation4], 0
      %s528 = sshll.u32 [#allocation5], 4
      %s529 = int_to_ptr.vmem [resolvable:$true] %s528
      %s530 = sshll.u32 %s7, 4
      %s531 = int_to_ptr.hbm [resolvable:$true] %s530
      %533 = dma.vmem_to_hbm [thread:$0]  %s529, 128, %s531, [#allocation4]
    $region37: #{mlp_forward.1} parent=1 // pred_fallthru
      _
    // Predicated region
    $region38: #{mlp_forward.1} parent=1 // pred_check
      _
    $region39: #{mlp_forward.1} parent=1 // pred_check_branch
      %535 = sbr.rel (0) target = $region41
    $region40: #{mlp_forward.1} parent=1 // pred_region
      %537 = dma.done [#allocation4], 128
    $region41: #{mlp_forward.1} parent=1 // pred_fallthru
      _
    %538 = vsyncpa [#allocation3], 1
    %539 = vsyncpa [#allocation4], 1

</llo_original>
